<compile_context>
chip_gen: v7x
topology: tpu7x:2x2x1
jax: 0.10.0
libtpu: 0.0.40
codegen_flags: <defaults>
</compile_context>

<pallas_src>
import functools

import jax
import jax.numpy as jnp
from jax.experimental import pallas as pl
from jax.experimental.pallas import tpu as pltpu


def _round_up(x, m):
    return (x + m - 1) // m * m


# ---------------------------------------------------------------------------
# Kernel: one batch-tile per grid step, two lane-dense MXU matmuls.
# ---------------------------------------------------------------------------
def _decoder_kernel(z_ref, t_ref, wx_ref, wty_ref, trow_ref, ox_ref, oty_ref):
    z = z_ref[...]
    # x_pred columns: lane-dense (multiple-of-128 wide) matmul, full-width vst.
    ox_ref[...] = jnp.dot(z, wx_ref[...], preferred_element_type=jnp.float32)
    # [t_pred | y_pred | pad] columns: z-part matmul + rank-1 t contribution.
    ty = jnp.dot(z, wty_ref[...], preferred_element_type=jnp.float32)
    trow = trow_ref[...]
    # where() keeps NaN/Inf in t from leaking into columns t does not feed.
    ty = ty + jnp.where(trow != 0.0, t_ref[...] * trow, 0.0)
    oty_ref[...] = ty


# ---------------------------------------------------------------------------
# Tile selection: ~2 MiB output payload per step, VMEM-budgeted, grid >= 2.
# ---------------------------------------------------------------------------
def _choose_tile(bs, z_dim, x_pad, *, target_out_bytes=2 << 20,
                 vmem_budget_bytes=20 << 20):
    zpad = max(128, _round_up(z_dim, 128))
    # Per-row VMEM bytes of the tile-shaped buffers (lane-padded): z, t, out_x, out_ty.
    per_row_bytes = 4 * (zpad + 128 + x_pad + 128)
    # Resident weights + one-hot row (double-buffered by the pipeline anyway).
    const_bytes = 2 * 4 * (_round_up(z_dim, 8) * (x_pad + 128) + 8 * 128)

    # Target ~2 MiB of output writeback per step (amortizes ~0.35 us/step).
    tile = _round_up(max(8, target_out_bytes // (4 * (x_pad + 128))), 8)
    # Cap by the double-buffered VMEM budget (safe for v7x's 64 MiB VMEM).
    tile_max = max(8, ((vmem_budget_bytes - const_bytes) // (2 * per_row_bytes)) // 8 * 8)
    tile = min(tile, tile_max)
    # Never larger than the (sublane-rounded) batch.
    bs8 = _round_up(bs, 8)
    tile = min(tile, bs8)
    # Keep grid length >= 2 when the batch allows, so both v7x TCs engage.
    if bs8 >= 16 and pl.cdiv(bs, tile) < 2:
        tile = _round_up(pl.cdiv(bs8, 2), 8)
    return tile


# ---------------------------------------------------------------------------
# Parameter packing (run once, outside the per-forward path).
# ---------------------------------------------------------------------------
def pack_decoder_params(params):
    """Fuse Decoder parameters into lane-dense kernel operands."""
    f32 = jnp.float32
    wx_raw = params["Wx"].astype(f32)                       # (z_dim, input_dim)
    z_dim, input_dim = wx_raw.shape
    x_pad = _round_up(input_dim, 128)

    wx = jnp.zeros((z_dim, x_pad), f32).at[:, :input_dim].set(wx_raw)
    wty = jnp.zeros((z_dim, 128), f32)
    wty = wty.at[:, 0:1].set(params["Wt"].astype(f32))       # t_pred column
    wty = wty.at[:, 1:2].set(params["Wyz"].astype(f32))      # y_pred (z part)
    # One-hot row carrying wyt so that y_pred = z@Wyz + t*wyt.
    trow = jnp.zeros((1, 128), f32).at[0, 1].set(params["wyt"].astype(f32)[0, 0])

    x_std_row = jnp.exp(params["x_log_std"].astype(f32)).reshape(1, input_dim)
    t_std_row = jnp.exp(params["t_log_std"].astype(f32)).reshape(1, 1)
    y_std_row = jnp.exp(params["y_log_std"].astype(f32)).reshape(1, 1)
    return dict(wx=wx, wty=wty, trow=trow, x_std_row=x_std_row,
                t_std_row=t_std_row, y_std_row=y_std_row, input_dim=input_dim)


# ---------------------------------------------------------------------------
# Forward
# ---------------------------------------------------------------------------
@functools.partial(jax.jit, static_argnames=("input_dim", "tile"))
def _decoder_jit(z, t, wx, wty, trow, x_std_row, t_std_row, y_std_row,
                 *, input_dim, tile):
    bs, z_dim = z.shape
    x_pad = wx.shape[1]
    zf = z.astype(jnp.float32)
    tf = t.astype(jnp.float32)

    # VMEM limit from actual footprint (+ headroom), capped below v7x's 64 MiB.
    zpad = max(128, _round_up(z_dim, 128))
    per_row_bytes = 4 * (zpad + 128 + x_pad + 128)
    const_bytes = 2 * 4 * (_round_up(z_dim, 8) * (x_pad + 128) + 8 * 128)
    vmem_limit = int(min(max(2 * tile * per_row_bytes + const_bytes + (8 << 20),
                             32 << 20), 60 << 20))

    grid = (pl.cdiv(bs, tile),)

    out_x, out_ty = pl.pallas_call(
        _decoder_kernel,
        out_shape=(
            jax.ShapeDtypeStruct((bs, x_pad), jnp.float32),
            jax.ShapeDtypeStruct((bs, 128), jnp.float32),
        ),
        grid_spec=pltpu.PrefetchScalarGridSpec(
            num_scalar_prefetch=0,
            grid=grid,
            in_specs=[
                pl.BlockSpec((tile, z_dim), lambda i: (i, 0)),   # z batch tile
                pl.BlockSpec((tile, 1), lambda i: (i, 0)),       # t batch tile
                pl.BlockSpec((z_dim, x_pad), lambda i: (0, 0)),  # Wx (resident)
                pl.BlockSpec((z_dim, 128), lambda i: (0, 0)),    # [Wt|Wyz|0] (resident)
                pl.BlockSpec((1, 128), lambda i: (0, 0)),        # wyt one-hot row
            ],
            out_specs=[
                pl.BlockSpec((tile, x_pad), lambda i: (i, 0)),   # x_pred slab
                pl.BlockSpec((tile, 128), lambda i: (i, 0)),     # [t_pred|y_pred|0]
            ],
        ),
        compiler_params=pltpu.CompilerParams(
            dimension_semantics=("parallel",),
            vmem_limit_bytes=vmem_limit,
        ),
    )(zf, tf, wx, wty, trow)

    # No-op when input_dim % 128 == 0; otherwise a small trailing-column trim.
    x_pred = out_x[:, :input_dim]
    t_pred = out_ty[:, 0:1]
    y_pred = out_ty[:, 1:2]

    # std outputs depend only on parameters -> broadcast outside the kernel.
    x_std = jnp.broadcast_to(x_std_row, (bs, input_dim))
    t_std = jnp.broadcast_to(t_std_row, (bs, 1))
    y_std = jnp.broadcast_to(y_std_row, (bs, 1))
    return x_pred, t_pred, y_pred, x_std, t_std, y_std


def decoder_forward(z, t, packed):
    """packed: output of pack_decoder_params (built once per parameter set)."""
    bs, z_dim = z.shape
    x_pad = packed["wx"].shape[1]
    tile = _choose_tile(bs, z_dim, x_pad)
    return _decoder_jit(z, t, packed["wx"], packed["wty"], packed["trow"],
                        packed["x_std_row"], packed["t_std_row"],
                        packed["y_std_row"],
                        input_dim=packed["input_dim"], tile=tile)


# ---------------------------------------------------------------------------
# Test harness
# ---------------------------------------------------------------------------
def _init_params(key, z_dim, input_dim):
    """Deterministic synthetic parameters (shapes match Decoder.__init__)."""
    ks = jax.random.split(key, 4)
    scale = 0.5
    return {
        # x_nns: input_dim independent Linear(z_dim, 1, bias=False) -> stacked
        "Wx": (scale * jax.random.normal(ks[0], (z_dim, input_dim))).astype(jnp.float32),
        # t_nn: Linear(z_dim, 1, bias=False)  (binary_t_y=False -> no bias)
        "Wt": (scale * jax.random.normal(ks[1], (z_dim, 1))).astype(jnp.float32),
        # y_nn: Linear(z_dim + 1, 1, bias=False), split into z-part and t-part
        "Wyz": (scale * jax.random.normal(ks[2], (z_dim, 1))).astype(jnp.float32),
        "wyt": (scale * jax.random.normal(ks[3], (1, 1))).astype(jnp.float32),
        # log-std parameters initialized to 1.0 (as in the module)
        "x_log_std": jnp.ones((1, input_dim), jnp.float32),
        "t_log_std": jnp.ones((1, 1), jnp.float32),
        "y_log_std": jnp.ones((1, 1), jnp.float32),
    }


def _reference(z, t, p):
    x_pred = z @ p["Wx"]
    t_pred = z @ p["Wt"]
    y_pred = z @ p["Wyz"] + t * p["wyt"][0, 0]
    bs = z.shape[0]
    x_std = jnp.broadcast_to(jnp.exp(p["x_log_std"]), (bs, p["Wx"].shape[1]))
    t_std = jnp.broadcast_to(jnp.exp(p["t_log_std"]), (bs, 1))
    y_std = jnp.broadcast_to(jnp.exp(p["y_log_std"]), (bs, 1))
    return x_pred, t_pred, y_pred, x_std, t_std, y_std


def _check(bs, z_dim, input_dim, seed):
    key = jax.random.PRNGKey(seed)
    k_z, k_t, k_p = jax.random.split(key, 3)
    z = jax.random.normal(k_z, (bs, z_dim), dtype=jnp.float32)
    t = jax.random.normal(k_t, (bs, 1), dtype=jnp.float32)
    params = _init_params(k_p, z_dim, input_dim)
    packed = pack_decoder_params(params)

    outs = jax.block_until_ready(decoder_forward(z, t, packed))
    refs = _reference(z, t, params)
    for o, r in zip(outs, refs):
        assert o.shape == r.shape and o.dtype == r.dtype
        assert jnp.allclose(o, r, atol=1e-5, rtol=1e-5)


if __name__ == "__main__":
    # Case 1: tiny batch (single partial block, block larger than batch).
    _check(bs=2, z_dim=4, input_dim=16, seed=0)
    # Case 2: small batch, single grid step.
    _check(bs=8, z_dim=4, input_dim=16, seed=0)
    # Case 3: batch forces grid >= 2 with a trailing partial block.
    _check(bs=40, z_dim=4, input_dim=16, seed=0)

    print("KERNEL_OK")
</pallas_src>

<mosaic_0001>
module attributes {stable_mosaic.version = 11 : i64} {
  func.func @_decoder_kernel(%arg0: i32, %arg1: memref<8x4xf32, #tpu.memory_space<vmem>>, %arg2: memref<8x1xf32, #tpu.memory_space<vmem>>, %arg3: memref<4x128xf32, #tpu.memory_space<vmem>>, %arg4: memref<4x128xf32, #tpu.memory_space<vmem>>, %arg5: memref<1x128xf32, #tpu.memory_space<vmem>>, %arg6: memref<8x128xf32, #tpu.memory_space<vmem>>, %arg7: memref<8x128xf32, #tpu.memory_space<vmem>>) attributes {dimension_semantics = [#tpu.dimension_semantics<parallel>], iteration_bounds = array<i64: 1>, scalar_prefetch = 0 : i64, scratch_operands = 0 : i64, tpu.core_type = #tpu.core_type<tc>, window_params = [{transform_indices = @transform_0, window_bounds = array<i64: 8, 4>}, {transform_indices = @transform_1, window_bounds = array<i64: 8, 1>}, {pipeline_mode = #tpu.pipeline_mode<synchronous>, transform_indices = @transform_2, window_bounds = array<i64: 4, 128>}, {pipeline_mode = #tpu.pipeline_mode<synchronous>, transform_indices = @transform_3, window_bounds = array<i64: 4, 128>}, {pipeline_mode = #tpu.pipeline_mode<synchronous>, transform_indices = @transform_4, window_bounds = array<i64: 1, 128>}, {transform_indices = @transform_5, window_bounds = array<i64: 8, 128>}, {transform_indices = @transform_6, window_bounds = array<i64: 8, 128>}]} {
    %c0 = arith.constant 0 : index
    %c0_0 = arith.constant 0 : index
    %0 = vector.load %arg1[%c0, %c0_0] : memref<8x4xf32, #tpu.memory_space<vmem>>, vector<8x4xf32>
    %c0_1 = arith.constant 0 : index
    %c0_2 = arith.constant 0 : index
    %1 = vector.load %arg3[%c0_1, %c0_2] : memref<4x128xf32, #tpu.memory_space<vmem>>, vector<4x128xf32>
    %cst = arith.constant dense<0.000000e+00> : vector<8x128xf32>
    %2 = tpu.matmul %0, %1, %cst {dimension_numbers = #tpu.dot_dimension_numbers<[1], [0], [0], [1], [0, 0, 1, 1], [], []>} : vector<8x4xf32>, vector<4x128xf32>, vector<8x128xf32> -> vector<8x128xf32>
    %c0_3 = arith.constant 0 : index
    %c0_4 = arith.constant 0 : index
    %3 = vector.load %arg6[%c0_3, %c0_4] : memref<8x128xf32, #tpu.memory_space<vmem>>, vector<8x128xf32>
    tpu.vector_store %arg6[%c0_3, %c0_4], %2 {strides = array<i32>} : memref<8x128xf32, #tpu.memory_space<vmem>>, vector<8x128xf32>,
    %c0_5 = arith.constant 0 : index
    %c0_6 = arith.constant 0 : index
    %4 = vector.load %arg4[%c0_5, %c0_6] : memref<4x128xf32, #tpu.memory_space<vmem>>, vector<4x128xf32>
    %cst_7 = arith.constant dense<0.000000e+00> : vector<8x128xf32>
    %5 = tpu.matmul %0, %4, %cst_7 {dimension_numbers = #tpu.dot_dimension_numbers<[1], [0], [0], [1], [0, 0, 1, 1], [], []>} : vector<8x4xf32>, vector<4x128xf32>, vector<8x128xf32> -> vector<8x128xf32>
    %c0_8 = arith.constant 0 : index
    %c0_9 = arith.constant 0 : index
    %6 = vector.load %arg5[%c0_8, %c0_9] : memref<1x128xf32, #tpu.memory_space<vmem>>, vector<1x128xf32>
    %cst_10 = arith.constant 0.000000e+00 : f32
    %7 = vector.broadcast %cst_10 : f32 to vector<1x128xf32>
    %8 = arith.cmpf one, %6, %7 : vector<1x128xf32>
    %c0_11 = arith.constant 0 : index
    %c0_12 = arith.constant 0 : index
    %9 = vector.load %arg2[%c0_11, %c0_12] : memref<8x1xf32, #tpu.memory_space<vmem>>, vector<8x1xf32>
    %10 = vector.broadcast %9 : vector<8x1xf32> to vector<8x128xf32>
    %11 = vector.broadcast %6 : vector<1x128xf32> to vector<8x128xf32>
    %12 = arith.mulf %10, %11 : vector<8x128xf32>
    %cst_13 = arith.constant 0.000000e+00 : f32
    %13 = vector.shape_cast %8 : vector<1x128xi1> to vector<1x128xi1>
    %14 = vector.broadcast %13 : vector<1x128xi1> to vector<8x128xi1>
    %15 = vector.broadcast %cst_13 : f32 to vector<8x128xf32>
    %16 = arith.select %14, %12, %15 : vector<8x128xi1>, vector<8x128xf32>
    %17 = arith.addf %5, %16 : vector<8x128xf32>
    %c0_14 = arith.constant 0 : index
    %c0_15 = arith.constant 0 : index
    %18 = vector.load %arg7[%c0_14, %c0_15] : memref<8x128xf32, #tpu.memory_space<vmem>>, vector<8x128xf32>
    tpu.vector_store %arg7[%c0_14, %c0_15], %17 {strides = array<i32>} : memref<8x128xf32, #tpu.memory_space<vmem>>, vector<8x128xf32>,
    return
  }
  func.func @transform_0(%arg0: i32) -> (i32, i32) {
    %c0_i32 = arith.constant 0 : i32
    %c0_i32_0 = arith.constant 0 : i32
    return %arg0, %c0_i32 : i32, i32
  }
  func.func @transform_1(%arg0: i32) -> (i32, i32) {
    %c0_i32 = arith.constant 0 : i32
    %c0_i32_0 = arith.constant 0 : i32
    return %arg0, %c0_i32 : i32, i32
  }
  func.func @transform_2(%arg0: i32) -> (i32, i32) {
    %c0_i32 = arith.constant 0 : i32
    %c0_i32_0 = arith.constant 0 : i32
    %c0_i32_1 = arith.constant 0 : i32
    return %c0_i32, %c0_i32_0 : i32, i32
  }
  func.func @transform_3(%arg0: i32) -> (i32, i32) {
    %c0_i32 = arith.constant 0 : i32
    %c0_i32_0 = arith.constant 0 : i32
    %c0_i32_1 = arith.constant 0 : i32
    return %c0_i32, %c0_i32_0 : i32, i32
  }
  func.func @transform_4(%arg0: i32) -> (i32, i32) {
    %c0_i32 = arith.constant 0 : i32
    %c0_i32_0 = arith.constant 0 : i32
    %c0_i32_1 = arith.constant 0 : i32
    return %c0_i32, %c0_i32_0 : i32, i32
  }
  func.func @transform_5(%arg0: i32) -> (i32, i32) {
    %c0_i32 = arith.constant 0 : i32
    %c0_i32_0 = arith.constant 0 : i32
    return %arg0, %c0_i32 : i32, i32
  }
  func.func @transform_6(%arg0: i32) -> (i32, i32) {
    %c0_i32 = arith.constant 0 : i32
    %c0_i32_0 = arith.constant 0 : i32
    return %arg0, %c0_i32 : i32, i32
  }
}

</mosaic_0001>

<llo_original>
// kernel: _decoder_jit.1
$region0: #{_decoder_jit.1}
  #allocation0 [shape = 'u32[]', space=smem, size = 0x4, offset = 0x4, fixed_abs, tag = 'smem constant byte address 0x4 - core index']
  #allocation1 [shape = 'u32[144,128]{1,0:T(1,128)}', space=vmem, size = 0x12000, scoped, tag = 'internal scratch']
  %s0 = inlined_call_operand.vmem [shape: f32[2,4], index: 0, kind: input, shape index: {}]
  %s1 = inlined_call_operand.vmem [shape: f32[2,1], index: 1, kind: input, shape index: {}]
  %s2 = inlined_call_operand.vmem [shape: f32[4,128], index: 2, kind: input, shape index: {}]
  %s3 = inlined_call_operand.vmem [shape: f32[4,128], index: 3, kind: input, shape index: {}]
  %s4 = inlined_call_operand.vmem [shape: f32[1,128], index: 4, kind: input, shape index: {}]
  %s5 = inlined_call_operand.hbm [shape: f32[2,128], index: 5, kind: output, shape index: {0}]
  %s6 = inlined_call_operand.vmem [shape: f32[2,128], index: 6, kind: output, shape index: {1}]
  %7 = xla_tuple %s5, %s6
  %s8 = sld [smem:[#allocation0]]
  $region68: #{_decoder_jit.1} parent=0
    _
  %s10 = ssub.s32 1, %s8
  %s11 = scalar_select 0, %s10, %s8
  $region1: #{_decoder_jit.1} parent=0
    #allocation2 [shape = 'u8[4096]{0}', space=vmem, size = 0x1000, scoped, tag = 'output window, operand 0, single buffered']
    #allocation3 [shape = 's32[1]{0}', space=sflag, size = 0x4, scoped, tag = 'scoped memory for _decoder_jit.1']
    #allocation4 [shape = 'u8[4096]{0}', space=vmem, size = 0x1000, scoped, tag = 'output window, operand 1, single buffered']
    %12 = vsyncpa [#allocation3], 0
    // Predicated region
    $region2: #{_decoder_jit.1} parent=1 // pred_check
      _
    $region3: #{_decoder_jit.1} parent=1 // pred_check_branch
      %14 = sbr.rel (0) target = $region5
    $region4: #{_decoder_jit.1} parent=1 // pred_region
      _
    $region5: #{_decoder_jit.1} parent=1 // pred_fallthru
      _
    // Predicated region
    $region6: #{_decoder_jit.1} parent=1 // pred_check
      _
    $region7: #{_decoder_jit.1} parent=1 // pred_check_branch
      %16 = sbr.rel (0) target = $region9
    $region8: #{_decoder_jit.1} parent=1 // pred_region
      _
    $region9: #{_decoder_jit.1} parent=1 // pred_fallthru
      _
    // Predicated region
    $region10: #{_decoder_jit.1} parent=1 // pred_check
      _
    $region11: #{_decoder_jit.1} parent=1 // pred_check_branch
      %18 = sbr.rel (0) target = $region13
    $region12: #{_decoder_jit.1} parent=1 // pred_region
      _
    $region13: #{_decoder_jit.1} parent=1 // pred_fallthru
      _
    // Predicated region
    $region14: #{_decoder_jit.1} parent=1 // pred_check
      _
    $region15: #{_decoder_jit.1} parent=1 // pred_check_branch
      %20 = sbr.rel (0) target = $region17
    $region16: #{_decoder_jit.1} parent=1 // pred_region
      _
    $region17: #{_decoder_jit.1} parent=1 // pred_fallthru
      _
    // Predicated region
    $region18: #{_decoder_jit.1} parent=1 // pred_check
      _
    $region19: #{_decoder_jit.1} parent=1 // pred_check_branch
      %22 = sbr.rel (0) target = $region21
    $region20: #{_decoder_jit.1} parent=1 // pred_region
      _
    $region21: #{_decoder_jit.1} parent=1 // pred_fallthru
      _
    %v23 = vld [vmem:[%s0] sm:$0xff]
    %v24 = vld [vmem:[%s2] sm:$0xf]
    %vm25 = vcmask 31744
    %v27 = vsel %vm25, %v23, 0
    %vm29 = vcmask 1043456
    %v31 = vsel %vm29, %v24, 0
    %33 = vmatprep.subr.mxu0 0.0
    %34 = vmatpush1.msra.mxu0 %v31
    %35 = vmatprep.subr.mxu0 0.0
    %36 = vmatpush1.msra.mxu0 0.0
    %37 = vmatprep.subr.mxu0 0.0
    %38 = vmatpush1.msra.mxu0 0.0
    %39 = vmatprep.subr.mxu0 0.0
    %40 = vmatpush1.msra.mxu0 0.0
    %41 = vmatprep.subr.mxu0 0.0
    %42 = vmatpush1.msra.mxu0 0.0
    %43 = vmatprep.subr.mxu0 0.0
    %44 = vmatpush1.msra.mxu0 0.0
    %45 = vmatprep.subr.mxu0 0.0
    %46 = vmatpush1.msra.mxu0 0.0
    %47 = vmatprep.subr.mxu0 0.0
    %48 = vmatpush1.msra.mxu0 0.0
    %49 = vmatprep.subr.mxu0 0.0
    %50 = vmatpush1.msra.mxu0 0.0
    %51 = vmatprep.subr.mxu0 0.0
    %52 = vmatpush1.msra.mxu0 0.0
    %53 = vmatprep.subr.mxu0 0.0
    %54 = vmatpush1.msra.mxu0 0.0
    %55 = vmatprep.subr.mxu0 0.0
    %56 = vmatpush1.msra.mxu0 0.0
    %57 = vmatprep.subr.mxu0 0.0
    %58 = vmatpush1.msra.mxu0 0.0
    %59 = vmatprep.subr.mxu0 0.0
    %60 = vmatpush1.msra.mxu0 0.0
    %61 = vmatprep.subr.mxu0 0.0
    %62 = vmatpush1.msra.mxu0 0.0
    %63 = vmatprep.subr.mxu0 0.0
    %64 = vmatpush1.msra.mxu0 0.0
    %65 = vmatprep.subr.mxu0 0.0
    %66 = vmatpush1.msra.mxu0 0.0
    %67 = vmatprep.subr.mxu0 0.0
    %68 = vmatpush1.msra.mxu0 0.0
    %69 = vmatprep.subr.mxu0 0.0
    %70 = vmatpush1.msra.mxu0 0.0
    %71 = vmatprep.subr.mxu0 0.0
    %72 = vmatpush1.msra.mxu0 0.0
    %73 = vmatprep.subr.mxu0 0.0
    %74 = vmatpush1.msra.mxu0 0.0
    %75 = vmatprep.subr.mxu0 0.0
    %76 = vmatpush1.msra.mxu0 0.0
    %77 = vmatprep.subr.mxu0 0.0
    %78 = vmatpush1.msra.mxu0 0.0
    %79 = vmatprep.subr.mxu0 0.0
    %80 = vmatpush1.msra.mxu0 0.0
    %81 = vmatprep.subr.mxu0 0.0
    %82 = vmatpush1.msra.mxu0 0.0
    %83 = vmatprep.subr.mxu0 0.0
    %84 = vmatpush1.msra.mxu0 0.0
    %85 = vmatprep.subr.mxu0 0.0
    %86 = vmatpush1.msra.mxu0 0.0
    %87 = vmatprep.subr.mxu0 0.0
    %88 = vmatpush1.msra.mxu0 0.0
    %89 = vmatprep.subr.mxu0 0.0
    %90 = vmatpush1.msra.mxu0 0.0
    %91 = vmatprep.subr.mxu0 0.0
    %92 = vmatpush1.msra.mxu0 0.0
    %93 = vmatprep.subr.mxu0 0.0
    %94 = vmatpush1.msra.mxu0 0.0
    %95 = vmatprep.subr.mxu0 0.0
    %96 = vmatpush1.msra.mxu0 0.0
    %97 = vmatprep.mubr.f32.mxu0 0.0
    %98 = vmatmul.mubr.f32.gmra.mrb[0].mxu0 %v27
    %v99 = vpop.f32.mrb[0].mxu0
    %v100 = vadd.f32 0.0, %v99
    %v101 = vpop.f32.mrb[0].mxu0
    %102 = vdwg.mxu0
    %103 = vst [vmem:[#allocation2] sm:$0xff] %v100
    %v104 = vld [vmem:[%s3] sm:$0xf]
    %v105 = vld [vmem:[%s4] sm:$0x1]
    %vm106 = vcmp.ne.f32.partialorder %v105, 0.0
    %v107 = vld [vmem:[%s1] sm:$0xff]
    %109 = vset.pattern.permute.xlu0 0
    %110 = vperm.xlu0 %109, %v107
    %v111 = vpop.permute.xlu0 %110
    %v114 = vlaneseq
    %v115 = vshrl.u32 %v114, 7
    %v116 = vsub.s32 0, %v115
    %v117 = vrot.slane %v105, %v116
    %v119 = vmul.f32 %v111, %v117
    %v120 = vsel %vm106, 1, 0
    %v121 = vlaneseq
    %v122 = vshrl.u32 %v121, 7
    %v123 = vsub.s32 0, %v122
    %v124 = vrot.slane %v120, %v123
    %vm125 = vcmp.eq.s32.totalorder %v124, 1
    %v126 = vsel %vm125, %v119, 0.0
    %v128 = vsel %vm29, %v104, 0
    %130 = vmatprep.subr.mxu0 0.0
    %131 = vmatpush1.msra.mxu0 %v128
    %132 = vmatprep.subr.mxu0 0.0
    %133 = vmatpush1.msra.mxu0 0.0
    %134 = vmatprep.subr.mxu0 0.0
    %135 = vmatpush1.msra.mxu0 0.0
    %136 = vmatprep.subr.mxu0 0.0
    %137 = vmatpush1.msra.mxu0 0.0
    %138 = vmatprep.subr.mxu0 0.0
    %139 = vmatpush1.msra.mxu0 0.0
    %140 = vmatprep.subr.mxu0 0.0
    %141 = vmatpush1.msra.mxu0 0.0
    %142 = vmatprep.subr.mxu0 0.0
    %143 = vmatpush1.msra.mxu0 0.0
    %144 = vmatprep.subr.mxu0 0.0
    %145 = vmatpush1.msra.mxu0 0.0
    %146 = vmatprep.subr.mxu0 0.0
    %147 = vmatpush1.msra.mxu0 0.0
    %148 = vmatprep.subr.mxu0 0.0
    %149 = vmatpush1.msra.mxu0 0.0
    %150 = vmatprep.subr.mxu0 0.0
    %151 = vmatpush1.msra.mxu0 0.0
    %152 = vmatprep.subr.mxu0 0.0
    %153 = vmatpush1.msra.mxu0 0.0
    %154 = vmatprep.subr.mxu0 0.0
    %155 = vmatpush1.msra.mxu0 0.0
    %156 = vmatprep.subr.mxu0 0.0
    %157 = vmatpush1.msra.mxu0 0.0
    %158 = vmatprep.subr.mxu0 0.0
    %159 = vmatpush1.msra.mxu0 0.0
    %160 = vmatprep.subr.mxu0 0.0
    %161 = vmatpush1.msra.mxu0 0.0
    %162 = vmatprep.subr.mxu0 0.0
    %163 = vmatpush1.msra.mxu0 0.0
    %164 = vmatprep.subr.mxu0 0.0
    %165 = vmatpush1.msra.mxu0 0.0
    %166 = vmatprep.subr.mxu0 0.0
    %167 = vmatpush1.msra.mxu0 0.0
    %168 = vmatprep.subr.mxu0 0.0
    %169 = vmatpush1.msra.mxu0 0.0
    %170 = vmatprep.subr.mxu0 0.0
    %171 = vmatpush1.msra.mxu0 0.0
    %172 = vmatprep.subr.mxu0 0.0
    %173 = vmatpush1.msra.mxu0 0.0
    %174 = vmatprep.subr.mxu0 0.0
    %175 = vmatpush1.msra.mxu0 0.0
    %176 = vmatprep.subr.mxu0 0.0
    %177 = vmatpush1.msra.mxu0 0.0
    %178 = vmatprep.subr.mxu0 0.0
    %179 = vmatpush1.msra.mxu0 0.0
    %180 = vmatprep.subr.mxu0 0.0
    %181 = vmatpush1.msra.mxu0 0.0
    %182 = vmatprep.subr.mxu0 0.0
    %183 = vmatpush1.msra.mxu0 0.0
    %184 = vmatprep.subr.mxu0 0.0
    %185 = vmatpush1.msra.mxu0 0.0
    %186 = vmatprep.subr.mxu0 0.0
    %187 = vmatpush1.msra.mxu0 0.0
    %188 = vmatprep.subr.mxu0 0.0
    %189 = vmatpush1.msra.mxu0 0.0
    %190 = vmatprep.subr.mxu0 0.0
    %191 = vmatpush1.msra.mxu0 0.0
    %192 = vmatprep.subr.mxu0 0.0
    %193 = vmatpush1.msra.mxu0 0.0
    %194 = vmatprep.mubr.f32.mxu0 0.0
    %195 = vmatmul.mubr.f32.gmra.mrb[0].mxu0 %v27
    %v196 = vpop.f32.mrb[0].mxu0
    %v197 = vadd.f32 %v126, %v196
    %v198 = vpop.f32.mrb[0].mxu0
    %199 = vdwg.mxu0
    %200 = vst [vmem:[#allocation4] sm:$0xff] %v197
    // Predicated region
    $region22: #{_decoder_jit.1} parent=1 // pred_check
      _
    $region23: #{_decoder_jit.1} parent=1 // pred_check_branch
      %202 = sbr.rel (0) target = $region25
    $region24: #{_decoder_jit.1} parent=1 // pred_region
      %s204 = ssub.s32 128, 32
      %205 = vsyncadd [#allocation3], %s204
      %s206 = sshll.u32 [#allocation2], 4
      %s207 = int_to_ptr.vmem [resolvable:$true] %s206
      %212 = dma.vmem_to_hbm [thread:$0]  %s207, 32, %s5, [#allocation3], 32, 32, 2
    $region25: #{_decoder_jit.1} parent=1 // pred_fallthru
      _
    // Predicated region
    $region26: #{_decoder_jit.1} parent=1 // pred_check
      _
    $region27: #{_decoder_jit.1} parent=1 // pred_check_branch
      %214 = sbr.rel (0) target = $region29
    $region28: #{_decoder_jit.1} parent=1 // pred_region
      // Predicated region
      $region30: #{_decoder_jit.1} parent=28 // pred_check
        _
      $region31: #{_decoder_jit.1} parent=28 // pred_check_branch
        %216 = sbr.rel (0) target = $region33
      $region32: #{_decoder_jit.1} parent=28 // pred_region
        // Predicated region
        $region34: #{_decoder_jit.1} parent=32 // pred_check
          _
        $region35: #{_decoder_jit.1} parent=32 // pred_check_branch
          %218 = sbr.rel target = $region37
        $region36: #{_decoder_jit.1} parent=32 // pred_region
          // Predicated region
          $region49: #{_decoder_jit.1} parent=36 // pred_check
            _
          $region50: #{_decoder_jit.1} parent=36 // pred_check_branch
            %233 = sbr.rel (0) target = $region52
          $region51: #{_decoder_jit.1} parent=36 // pred_region
            loop: start=0, step=1, limit=1
            $region53: #{_decoder_jit.1} parent=51 // loop_pre_header
              _
            $region54: #{_decoder_jit.1} parent=51 // loop_header
              %s236 = sphi 0, %s240
              %p237 = scmp.ge.s32.totalorder %s236, 1
              %s241 = sphi [#allocation4], [#allocation4]
              %s242 = sphi %s6, %s6
            $region55: #{_decoder_jit.1} parent=51 // loop_header_branch
              %239 = sbr.rel (%p237) target = $region59
            $region56: #{_decoder_jit.1} parent=51 // loop_body
              %v243 = vld [vmem:[%s241] sm:$0x3]
              %244 = vst [vmem:[%s242] sm:$0x3] %v243
            $region57: #{_decoder_jit.1} parent=51 // loop_footer
              %s240 = sadd.s32 1, %s236
            $region58: #{_decoder_jit.1} parent=51 // loop_footer_branch
              %235 = sbr.rel target = $region54
            $region59: #{_decoder_jit.1} parent=51 // loop_exit
              _
          $region52: #{_decoder_jit.1} parent=36 // pred_fallthru
            _
        $region37: #{_decoder_jit.1} parent=32 // pred_fallthru
          _
        // Predicated region
        $region38: #{_decoder_jit.1} parent=32 // pred_check
          _
        $region39: #{_decoder_jit.1} parent=32 // pred_check_branch
          %220 = sbr.rel (0) target = $region41
        $region40: #{_decoder_jit.1} parent=32 // pred_region
          loop: start=0, step=1, limit=1
          $region42: #{_decoder_jit.1} parent=40 // loop_pre_header
            _
          $region43: #{_decoder_jit.1} parent=40 // loop_header
            %s223 = sphi 0, %s227
            %p224 = scmp.ge.s32.totalorder %s223, 1
            %s228 = sphi [#allocation4], [#allocation4]
            %s229 = sphi %s6, %s6
          $region44: #{_decoder_jit.1} parent=40 // loop_header_branch
            %226 = sbr.rel (%p224) target = $region48
          $region45: #{_decoder_jit.1} parent=40 // loop_body
            %v230 = vld [vmem:[%s228] sm:$0x3]
            %231 = vst [vmem:[%s229] sm:$0x3] %v230
          $region46: #{_decoder_jit.1} parent=40 // loop_footer
            %s227 = sadd.s32 1, %s223
          $region47: #{_decoder_jit.1} parent=40 // loop_footer_branch
            %222 = sbr.rel target = $region43
          $region48: #{_decoder_jit.1} parent=40 // loop_exit
            _
        $region41: #{_decoder_jit.1} parent=32 // pred_fallthru
          _
      $region33: #{_decoder_jit.1} parent=28 // pred_fallthru
        _
      %245 = vnop
    $region29: #{_decoder_jit.1} parent=1 // pred_fallthru
      _
    // Predicated region
    $region60: #{_decoder_jit.1} parent=1 // pred_check
      _
    $region61: #{_decoder_jit.1} parent=1 // pred_check_branch
      %247 = sbr.rel (0) target = $region63
    $region62: #{_decoder_jit.1} parent=1 // pred_region
      %248 = dma.done [#allocation3], 128
    $region63: #{_decoder_jit.1} parent=1 // pred_fallthru
      _
    // Predicated region
    $region64: #{_decoder_jit.1} parent=1 // pred_check
      _
    $region65: #{_decoder_jit.1} parent=1 // pred_check_branch
      %250 = sbr.rel (0) target = $region67
    $region66: #{_decoder_jit.1} parent=1 // pred_region
      _
    $region67: #{_decoder_jit.1} parent=1 // pred_fallthru
      _
    %251 = vsyncpa [#allocation3], 1

</llo_original>
